<compile_context>
chip_gen: v5e
topology: v5e:2x2
jax: 0.10.0
libtpu: 0.0.40
codegen_flags: <defaults>
</compile_context>

<pallas_src>
import jax
import jax.numpy as jnp
from jax.experimental import pallas as pl
from jax.experimental.pallas import tpu as pltpu

HIDDEN = 512
LANE = 128
BATCH_ALIGN = 16      # bf16 sublane packing -> align multi-tile batch tiles to 16
MAX_TB = 1024         # max batch rows per grid step (review: sweep 1024-2048)
MIN_SPLIT_B = 64      # above this, force >= 2 grid points so v7x's 2 TCs both work


def _round_up(x, m):
    return (x + m - 1) // m * m


def _forward_block(x, w1, wh, bh, b1=None):
    """One batch tile of the fused DuelingDQN forward.

    x  : (TB, Dp)   f32 or bf16 activations
    w1 : (Dp, 512)  bf16
    b1 : (1, 512)   bf16, or None (fcl bias folded into w1's ones-column row)
    wh : (512, 128) bf16 fused V|A head (col 0 = V, cols 1..n_actions = A)
    bh : (1, 128)   f32 fused head bias
    """
    # bf16 x bf16 on the MXU, f32 accumulation.
    h = jnp.dot(x.astype(jnp.bfloat16), w1, preferred_element_type=jnp.float32)
    # Bias + ReLU in bf16: native VALU dtype on v6e/v7x, halves vreg issues on
    # the (TB, 512) elementwise chain.  (On v5e an f32 chain would be slightly
    # preferable; kept uniform here.)
    h = h.astype(jnp.bfloat16)
    if b1 is not None:
        h = h + b1
    h = jnp.maximum(h, 0)
    # Fused V|A head: one lane-dense (TB, 128) matmul, f32 accumulate + bias.
    o = jnp.dot(h, wh, preferred_element_type=jnp.float32)
    return o + bh


def _kernel_with_bias(x_ref, w1_ref, b1_ref, wh_ref, bh_ref, o_ref):
    o_ref[...] = _forward_block(
        x_ref[...], w1_ref[...], wh_ref[...], bh_ref[...], b1=b1_ref[...]
    ).astype(o_ref.dtype)


def _kernel_folded_bias(x_ref, w1_ref, wh_ref, bh_ref, o_ref):
    o_ref[...] = _forward_block(
        x_ref[...], w1_ref[...], wh_ref[...], bh_ref[...]
    ).astype(o_ref.dtype)


def prepare_params(params, input_dims, n_actions):
    """One-time conversion of PyTorch-layout (out,in) params to kernel layout.

    Returns bf16 (in,out) weights and a fused head weight/bias where column 0
    is V and columns 1..n_actions are A (rest zero-padded to 128 lanes).
    When input_dims is not a multiple of 128 the fcl bias is folded into the
    padded feature column (ones-column trick), so no separate b1 operand.
    """
    assert 1 + n_actions <= LANE, "fused V|A head assumes 1 + n_actions <= 128"
    head_pad = LANE  # keep 128: one column pass on v5e MXU, half pass on v6e/v7x
    fold_bias = (input_dims % LANE) != 0
    d_pad = input_dims if not fold_bias else _round_up(input_dims + 1, LANE)

    w1 = jnp.zeros((d_pad, HIDDEN), jnp.float32)
    w1 = w1.at[:input_dims, :].set(params["fcl_w"].T)
    if fold_bias:
        # Row `input_dims` multiplies the ones-column of x -> adds fcl_b on the MXU.
        w1 = w1.at[input_dims, :].set(params["fcl_b"])
        b1 = None
    else:
        b1 = params["fcl_b"][None, :].astype(jnp.bfloat16)           # (1, 512)
    w1 = w1.astype(jnp.bfloat16)

    wh = jnp.zeros((HIDDEN, head_pad), jnp.float32)
    wh = wh.at[:, 0:1].set(params["V_w"].T)                          # V column
    wh = wh.at[:, 1:1 + n_actions].set(params["A_w"].T)              # A columns
    wh = wh.astype(jnp.bfloat16)

    bh = jnp.zeros((1, head_pad), jnp.float32)
    bh = bh.at[0, 0].set(params["V_b"][0])
    bh = bh.at[0, 1:1 + n_actions].set(params["A_b"])

    return {"w1": w1, "b1": b1, "wh": wh, "bh": bh,
            "input_dims": input_dims, "n_actions": n_actions}


def dueling_dqn_forward(state, prepared):
    """state: (B, input_dims) f32. prepared: output of prepare_params. -> (V, A) f32."""
    B, D = state.shape
    assert D == prepared["input_dims"]
    n_actions = prepared["n_actions"]
    fold_bias = prepared["b1"] is None
    d_pad = prepared["w1"].shape[0]
    head_pad = prepared["wh"].shape[1]

    # ---- batch tiling: large tiles, >= 2 programs once B > MIN_SPLIT_B ----
    if B <= MIN_SPLIT_B:
        grid = 1
        tb = B                                   # single full-array block (always legal)
    else:
        n_tiles = max(2, pl.cdiv(B, MAX_TB))     # >=2 so both v7x TCs get work
        tb = _round_up(pl.cdiv(B, n_tiles), BATCH_ALIGN)
        grid = pl.cdiv(B, tb)

    if not fold_bias:
        # D % 128 == 0: pass the raw f32 state straight in (no wrapper pad/cast
        # copy); bf16 cast happens inside the kernel. A partial final batch
        # block only computes garbage rows that are never stored / sliced off.
        x = state
        out_rows = B
        kernel = _kernel_with_bias
        in_specs = [
            pl.BlockSpec((tb, d_pad), lambda i: (i, 0)),         # state tile (pipelined)
            pl.BlockSpec((d_pad, HIDDEN), lambda i: (0, 0)),     # w1: resident in VMEM
            pl.BlockSpec((1, HIDDEN), lambda i: (0, 0)),         # b1: resident
            pl.BlockSpec((HIDDEN, head_pad), lambda i: (0, 0)),  # fused head W: resident
            pl.BlockSpec((1, head_pad), lambda i: (0, 0)),       # fused head b: resident
        ]
        operands = (x, prepared["w1"], prepared["b1"],
                    prepared["wh"], prepared["bh"])
    else:
        # D % 128 != 0: a pad copy is unavoidable, so do it once in bf16 and
        # use the slack column at index D as a ones-column (folded fcl bias).
        b_rows = tb * grid
        x = jnp.zeros((b_rows, d_pad), jnp.bfloat16)
        x = x.at[:B, :D].set(state.astype(jnp.bfloat16))
        x = x.at[:B, D].set(1.0)                                 # ones column -> +fcl_b
        out_rows = b_rows
        kernel = _kernel_folded_bias
        in_specs = [
            pl.BlockSpec((tb, d_pad), lambda i: (i, 0)),
            pl.BlockSpec((d_pad, HIDDEN), lambda i: (0, 0)),
            pl.BlockSpec((HIDDEN, head_pad), lambda i: (0, 0)),
            pl.BlockSpec((1, head_pad), lambda i: (0, 0)),
        ]
        operands = (x, prepared["w1"], prepared["wh"], prepared["bh"])

    out = pl.pallas_call(
        kernel,
        out_shape=jax.ShapeDtypeStruct((out_rows, head_pad), jnp.bfloat16),
        grid=(grid,),
        in_specs=in_specs,
        out_specs=pl.BlockSpec((tb, head_pad), lambda i: (i, 0)),
        compiler_params=pltpu.CompilerParams(
            dimension_semantics=("parallel",)),
    )(*operands)

    V = out[:B, 0:1].astype(jnp.float32)
    A = out[:B, 1:1 + n_actions].astype(jnp.float32)
    return V, A


def init_params(key, input_dims, hidden, n_actions):
    """Deterministic init mimicking nn.Linear default (uniform +/- 1/sqrt(fan_in))."""
    ks = jax.random.split(key, 6)

    def lin(kw, kb, fan_in, fan_out):
        bound = 1.0 / jnp.sqrt(fan_in)
        w = jax.random.uniform(kw, (fan_out, fan_in), jnp.float32, -bound, bound)
        b = jax.random.uniform(kb, (fan_out,), jnp.float32, -bound, bound)
        return w, b

    fcl_w, fcl_b = lin(ks[0], ks[1], input_dims, hidden)
    V_w, V_b = lin(ks[2], ks[3], hidden, 1)
    A_w, A_b = lin(ks[4], ks[5], hidden, n_actions)
    return {"fcl_w": fcl_w, "fcl_b": fcl_b,
            "V_w": V_w, "V_b": V_b,
            "A_w": A_w, "A_b": A_b}


def reference_forward(state, params):
    h = jnp.maximum(state @ params["fcl_w"].T + params["fcl_b"], 0.0)
    V = h @ params["V_w"].T + params["V_b"]
    A = h @ params["A_w"].T + params["A_b"]
    return V, A


if __name__ == "__main__":
    key = jax.random.PRNGKey(0)

    # Case A: input_dims % 128 == 0 -> raw f32 state goes straight to the kernel.
    k1, k2, key = jax.random.split(key, 3)
    batch_a, dims_a, acts_a = 8, 128, 6
    params_a = init_params(k1, dims_a, HIDDEN, acts_a)
    state_a = jax.random.normal(k2, (batch_a, dims_a), jnp.float32)
    prep_a = prepare_params(params_a, dims_a, acts_a)
    V_a, A_a = dueling_dqn_forward(state_a, prep_a)
    V_a, A_a = jax.block_until_ready((V_a, A_a))
    V_ra, A_ra = reference_forward(state_a, params_a)
    assert V_a.shape == (batch_a, 1) and A_a.shape == (batch_a, acts_a)
    # bf16 weights/activations/output with f32 accumulation: loosened tolerance.
    assert jnp.allclose(V_a, V_ra, atol=3e-2, rtol=3e-2)
    assert jnp.allclose(A_a, A_ra, atol=3e-2, rtol=3e-2)

    # Case B: input_dims % 128 != 0 (bias folded into ones-column) and a batch
    # large enough to exercise the >= 2-tile grid path.
    k3, k4, key = jax.random.split(key, 3)
    batch_b, dims_b, acts_b = 80, 96, 4
    params_b = init_params(k3, dims_b, HIDDEN, acts_b)
    state_b = jax.random.normal(k4, (batch_b, dims_b), jnp.float32)
    prep_b = prepare_params(params_b, dims_b, acts_b)
    V_b, A_b = dueling_dqn_forward(state_b, prep_b)
    V_b, A_b = jax.block_until_ready((V_b, A_b))
    V_rb, A_rb = reference_forward(state_b, params_b)
    assert V_b.shape == (batch_b, 1) and A_b.shape == (batch_b, acts_b)
    assert jnp.allclose(V_b, V_rb, atol=3e-2, rtol=3e-2)
    assert jnp.allclose(A_b, A_rb, atol=3e-2, rtol=3e-2)

    print("KERNEL_OK")
</pallas_src>

<mosaic_0001>
module attributes {stable_mosaic.version = 11 : i64} {
  func.func @_kernel_with_bias(%arg0: i32, %arg1: memref<8x128xf32, #tpu.memory_space<vmem>>, %arg2: memref<128x512xbf16, #tpu.memory_space<vmem>>, %arg3: memref<1x512xbf16, #tpu.memory_space<vmem>>, %arg4: memref<512x128xbf16, #tpu.memory_space<vmem>>, %arg5: memref<1x128xf32, #tpu.memory_space<vmem>>, %arg6: memref<8x128xbf16, #tpu.memory_space<vmem>>) attributes {dimension_semantics = [#tpu.dimension_semantics<parallel>], iteration_bounds = array<i64: 1>, scalar_prefetch = 0 : i64, scratch_operands = 0 : i64, tpu.core_type = #tpu.core_type<tc>, window_params = [{transform_indices = @transform_0, window_bounds = array<i64: 8, 128>}, {pipeline_mode = #tpu.pipeline_mode<synchronous>, transform_indices = @transform_1, window_bounds = array<i64: 128, 512>}, {pipeline_mode = #tpu.pipeline_mode<synchronous>, transform_indices = @transform_2, window_bounds = array<i64: 1, 512>}, {pipeline_mode = #tpu.pipeline_mode<synchronous>, transform_indices = @transform_3, window_bounds = array<i64: 512, 128>}, {pipeline_mode = #tpu.pipeline_mode<synchronous>, transform_indices = @transform_4, window_bounds = array<i64: 1, 128>}, {transform_indices = @transform_5, window_bounds = array<i64: 8, 128>}]} {
    %c0 = arith.constant 0 : index
    %c0_0 = arith.constant 0 : index
    %0 = vector.load %arg1[%c0, %c0_0] : memref<8x128xf32, #tpu.memory_space<vmem>>, vector<8x128xf32>
    %c0_1 = arith.constant 0 : index
    %c0_2 = arith.constant 0 : index
    %1 = vector.load %arg2[%c0_1, %c0_2] : memref<128x512xbf16, #tpu.memory_space<vmem>>, vector<128x512xbf16>
    %c0_3 = arith.constant 0 : index
    %c0_4 = arith.constant 0 : index
    %2 = vector.load %arg4[%c0_3, %c0_4] : memref<512x128xbf16, #tpu.memory_space<vmem>>, vector<512x128xbf16>
    %c0_5 = arith.constant 0 : index
    %c0_6 = arith.constant 0 : index
    %3 = vector.load %arg5[%c0_5, %c0_6] : memref<1x128xf32, #tpu.memory_space<vmem>>, vector<1x128xf32>
    %c0_7 = arith.constant 0 : index
    %c0_8 = arith.constant 0 : index
    %4 = vector.load %arg3[%c0_7, %c0_8] : memref<1x512xbf16, #tpu.memory_space<vmem>>, vector<1x512xbf16>
    %5 = arith.truncf %0 : vector<8x128xf32> to vector<8x128xbf16>
    %cst = arith.constant dense<0.000000e+00> : vector<8x512xf32>
    %6 = tpu.matmul %5, %1, %cst {dimension_numbers = #tpu.dot_dimension_numbers<[1], [0], [0], [1], [0, 0, 1, 1], [], []>} : vector<8x128xbf16>, vector<128x512xbf16>, vector<8x512xf32> -> vector<8x512xf32>
    %7 = arith.truncf %6 : vector<8x512xf32> to vector<8x512xbf16>
    %8 = vector.broadcast %4 : vector<1x512xbf16> to vector<8x512xbf16>
    %9 = arith.addf %7, %8 : vector<8x512xbf16>
    %cst_9 = arith.constant 0.000000e+00 : bf16
    %10 = vector.broadcast %cst_9 : bf16 to vector<8x512xbf16>
    %11 = arith.maximumf %9, %10 : vector<8x512xbf16>
    %cst_10 = arith.constant dense<0.000000e+00> : vector<8x128xf32>
    %12 = tpu.matmul %11, %2, %cst_10 {dimension_numbers = #tpu.dot_dimension_numbers<[1], [0], [0], [1], [0, 0, 1, 1], [], []>} : vector<8x512xbf16>, vector<512x128xbf16>, vector<8x128xf32> -> vector<8x128xf32>
    %13 = vector.broadcast %3 : vector<1x128xf32> to vector<8x128xf32>
    %14 = arith.addf %12, %13 : vector<8x128xf32>
    %15 = arith.truncf %14 : vector<8x128xf32> to vector<8x128xbf16>
    %c0_11 = arith.constant 0 : index
    %c0_12 = arith.constant 0 : index
    %16 = vector.load %arg6[%c0_11, %c0_12] : memref<8x128xbf16, #tpu.memory_space<vmem>>, vector<8x128xbf16>
    tpu.vector_store %arg6[%c0_11, %c0_12], %15 {strides = array<i32>} : memref<8x128xbf16, #tpu.memory_space<vmem>>, vector<8x128xbf16>,
    return
  }
  func.func @transform_0(%arg0: i32) -> (i32, i32) {
    %c0_i32 = arith.constant 0 : i32
    %c0_i32_0 = arith.constant 0 : i32
    return %arg0, %c0_i32 : i32, i32
  }
  func.func @transform_1(%arg0: i32) -> (i32, i32) {
    %c0_i32 = arith.constant 0 : i32
    %c0_i32_0 = arith.constant 0 : i32
    %c0_i32_1 = arith.constant 0 : i32
    return %c0_i32, %c0_i32_0 : i32, i32
  }
  func.func @transform_2(%arg0: i32) -> (i32, i32) {
    %c0_i32 = arith.constant 0 : i32
    %c0_i32_0 = arith.constant 0 : i32
    %c0_i32_1 = arith.constant 0 : i32
    return %c0_i32, %c0_i32_0 : i32, i32
  }
  func.func @transform_3(%arg0: i32) -> (i32, i32) {
    %c0_i32 = arith.constant 0 : i32
    %c0_i32_0 = arith.constant 0 : i32
    %c0_i32_1 = arith.constant 0 : i32
    return %c0_i32, %c0_i32_0 : i32, i32
  }
  func.func @transform_4(%arg0: i32) -> (i32, i32) {
    %c0_i32 = arith.constant 0 : i32
    %c0_i32_0 = arith.constant 0 : i32
    %c0_i32_1 = arith.constant 0 : i32
    return %c0_i32, %c0_i32_0 : i32, i32
  }
  func.func @transform_5(%arg0: i32) -> (i32, i32) {
    %c0_i32 = arith.constant 0 : i32
    %c0_i32_0 = arith.constant 0 : i32
    return %arg0, %c0_i32 : i32, i32
  }
}

</mosaic_0001>

<llo_original>
// kernel: tpu_custom_call.1
$region0: #{tpu_custom_call.1}
  #allocation0 [shape = 'u32[]', space=smem, size = 0x4, offset = 0x4, fixed_abs, tag = 'smem constant byte address 0x4 - core index']
  #allocation1 [shape = 'u32[72,128]{1,0:T(1,128)}', space=vmem, size = 0x9000, scoped, tag = 'internal scratch']
  %s0 = inlined_call_operand.hbm [shape: f32[8,128], index: 0, kind: input, shape index: {}]
  %s1 = inlined_call_operand.hbm [shape: bf16[128,512], index: 1, kind: input, shape index: {}]
  %s2 = inlined_call_operand.hbm [shape: bf16[1,512], index: 2, kind: input, shape index: {}]
  %s3 = inlined_call_operand.hbm [shape: bf16[512,128], index: 3, kind: input, shape index: {}]
  %s4 = inlined_call_operand.vmem [shape: f32[1,128], index: 4, kind: input, shape index: {}]
  %s5 = inlined_call_operand.hbm [shape: bf16[8,128], index: 5, kind: output, shape index: {}]
  %s6 = sld [smem:[#allocation0]]
  $region46: #{tpu_custom_call.1} parent=0
    _
  %s8 = ssub.s32 1, %s6
  %s9 = scalar_select 0, %s8, %s6
  $region1: #{tpu_custom_call.1} parent=0
    #allocation2 [shape = 'u8[4096]{0}', space=vmem, size = 0x1000, scoped, tag = 'input window, operand 0, single buffered']
    #allocation3 [shape = 's32[1]{0}', space=sflag, size = 0x4, scoped, tag = 'scoped memory for tpu_custom_call.1']
    #allocation4 [shape = 's32[1]{0}', space=sflag, size = 0x4, scoped, tag = 'scoped memory for tpu_custom_call.1']
    #allocation5 [shape = 'u8[131072]{0}', space=vmem, size = 0x20000, scoped, tag = 'input window, operand 1, single buffered']
    #allocation6 [shape = 's32[1]{0}', space=sflag, size = 0x4, scoped, tag = 'scoped memory for tpu_custom_call.1']
    #allocation7 [shape = 'u8[2048]{0}', space=vmem, size = 0x800, scoped, tag = 'input window, operand 2, single buffered']
    #allocation8 [shape = 'u8[131072]{0}', space=vmem, size = 0x20000, scoped, tag = 'input window, operand 3, single buffered']
    #allocation9 [shape = 's32[1]{0}', space=sflag, size = 0x4, scoped, tag = 'scoped memory for tpu_custom_call.1']
    #allocation10 [shape = 'u8[2048]{0}', space=vmem, size = 0x800, scoped, tag = 'output window, operand 0, single buffered']
    %10 = vsyncpa [#allocation3], 0
    %11 = vsyncpa [#allocation6], 0
    %12 = vsyncpa [#allocation9], 0
    %13 = vsyncpa [#allocation4], 0
    // Predicated region
    $region2: #{tpu_custom_call.1} parent=1 // pred_check
      _
    $region3: #{tpu_custom_call.1} parent=1 // pred_check_branch
      %15 = sbr.rel (0) target = $region5
    $region4: #{tpu_custom_call.1} parent=1 // pred_region
      %17 = vsyncadd [#allocation3], 0
      %s19 = sshll.u32 %s0, 4
      %s20 = int_to_ptr.hbm [resolvable:$true] %s19
      %s21 = sshll.u32 [#allocation2], 4
      %s22 = int_to_ptr.vmem [resolvable:$true] %s21
      %24 = dma.hbm_to_vmem [thread:$0]  %s20, 128, %s22, [#allocation3]
    $region5: #{tpu_custom_call.1} parent=1 // pred_fallthru
      _
    // Predicated region
    $region6: #{tpu_custom_call.1} parent=1 // pred_check
      _
    $region7: #{tpu_custom_call.1} parent=1 // pred_check_branch
      %26 = sbr.rel (0) target = $region9
    $region8: #{tpu_custom_call.1} parent=1 // pred_region
      %28 = vsyncadd [#allocation6], 0
      %s29 = sshll.u32 %s1, 4
      %s30 = int_to_ptr.hbm [resolvable:$true] %s29
      %s31 = sshll.u32 [#allocation5], 4
      %s32 = int_to_ptr.vmem [resolvable:$true] %s31
      %37 = dma.hbm_to_vmem [thread:$0]  %s30, 4096, %s32, [#allocation6], 256, 256, 16
    $region9: #{tpu_custom_call.1} parent=1 // pred_fallthru
      _
    // Predicated region
    $region10: #{tpu_custom_call.1} parent=1 // pred_check
      _
    $region11: #{tpu_custom_call.1} parent=1 // pred_check_branch
      %39 = sbr.rel (0) target = $region13
    $region12: #{tpu_custom_call.1} parent=1 // pred_region
      %41 = vsyncadd [#allocation6], 0
      %s43 = sshll.u32 %s2, 4
      %s44 = int_to_ptr.hbm [resolvable:$true] %s43
      %s45 = sshll.u32 [#allocation7], 4
      %s46 = int_to_ptr.vmem [resolvable:$true] %s45
      %48 = dma.hbm_to_vmem [thread:$0]  %s44, 64, %s46, [#allocation6]
    $region13: #{tpu_custom_call.1} parent=1 // pred_fallthru
      _
    // Predicated region
    $region14: #{tpu_custom_call.1} parent=1 // pred_check
      _
    $region15: #{tpu_custom_call.1} parent=1 // pred_check_branch
      %50 = sbr.rel (0) target = $region17
    $region16: #{tpu_custom_call.1} parent=1 // pred_region
      %52 = vsyncadd [#allocation9], 0
      %s53 = sshll.u32 %s3, 4
      %s54 = int_to_ptr.hbm [resolvable:$true] %s53
      %s55 = sshll.u32 [#allocation8], 4
      %s56 = int_to_ptr.vmem [resolvable:$true] %s55
      %61 = dma.hbm_to_vmem [thread:$0]  %s54, 4096, %s56, [#allocation9], 64, 64, 4
    $region17: #{tpu_custom_call.1} parent=1 // pred_fallthru
      _
    // Predicated region
    $region18: #{tpu_custom_call.1} parent=1 // pred_check
      _
    $region19: #{tpu_custom_call.1} parent=1 // pred_check_branch
      %63 = sbr.rel (0) target = $region21
    $region20: #{tpu_custom_call.1} parent=1 // pred_region
      _
    $region21: #{tpu_custom_call.1} parent=1 // pred_fallthru
      _
    // Predicated region
    $region22: #{tpu_custom_call.1} parent=1 // pred_check
      _
    $region23: #{tpu_custom_call.1} parent=1 // pred_check_branch
      %65 = sbr.rel (0) target = $region25
    $region24: #{tpu_custom_call.1} parent=1 // pred_region
      %67 = dma.done [#allocation3], 128
    $region25: #{tpu_custom_call.1} parent=1 // pred_fallthru
      _
    // Predicated region
    $region26: #{tpu_custom_call.1} parent=1 // pred_check
      _
    $region27: #{tpu_custom_call.1} parent=1 // pred_check_branch
      %69 = sbr.rel (0) target = $region29
    $region28: #{tpu_custom_call.1} parent=1 // pred_region
      %71 = dma.done [#allocation6], 4096
    $region29: #{tpu_custom_call.1} parent=1 // pred_fallthru
      _
    // Predicated region
    $region30: #{tpu_custom_call.1} parent=1 // pred_check
      _
    $region31: #{tpu_custom_call.1} parent=1 // pred_check_branch
      %73 = sbr.rel (0) target = $region33
    $region32: #{tpu_custom_call.1} parent=1 // pred_region
      %75 = dma.done [#allocation6], 64
    $region33: #{tpu_custom_call.1} parent=1 // pred_fallthru
      _
    // Predicated region
    $region34: #{tpu_custom_call.1} parent=1 // pred_check
      _
    $region35: #{tpu_custom_call.1} parent=1 // pred_check_branch
      %77 = sbr.rel (0) target = $region37
    $region36: #{tpu_custom_call.1} parent=1 // pred_region
      %79 = dma.done [#allocation9], 4096
    $region37: #{tpu_custom_call.1} parent=1 // pred_fallthru
      _
    %v80 = vld [vmem:[#allocation2] sm:$0xff]
    %v81 = vld [vmem:[#allocation5] sm:$0xff]
    %v82 = vld [vmem:[#allocation5 + $0x8] sm:$0xff]
    %v83 = vld [vmem:[#allocation5 + $0x10] sm:$0xff]
    %v84 = vld [vmem:[#allocation5 + $0x18] sm:$0xff]
    %v85 = vld [vmem:[#allocation5 + $0x20] sm:$0xff]
    %v86 = vld [vmem:[#allocation5 + $0x28] sm:$0xff]
    %v87 = vld [vmem:[#allocation5 + $0x30] sm:$0xff]
    %v88 = vld [vmem:[#allocation5 + $0x38] sm:$0xff]
    %v89 = vld [vmem:[#allocation5 + $0x40] sm:$0xff]
    %v90 = vld [vmem:[#allocation5 + $0x48] sm:$0xff]
    %v91 = vld [vmem:[#allocation5 + $0x50] sm:$0xff]
    %v92 = vld [vmem:[#allocation5 + $0x58] sm:$0xff]
    %v93 = vld [vmem:[#allocation5 + $0x60] sm:$0xff]
    %v94 = vld [vmem:[#allocation5 + $0x68] sm:$0xff]
    %v95 = vld [vmem:[#allocation5 + $0x70] sm:$0xff]
    %v96 = vld [vmem:[#allocation5 + $0x78] sm:$0xff]
    %v97 = vld [vmem:[#allocation5 + $0x80] sm:$0xff]
    %v98 = vld [vmem:[#allocation5 + $0x88] sm:$0xff]
    %v99 = vld [vmem:[#allocation5 + $0x90] sm:$0xff]
    %v100 = vld [vmem:[#allocation5 + $0x98] sm:$0xff]
    %v101 = vld [vmem:[#allocation5 + $0xa0] sm:$0xff]
    %v102 = vld [vmem:[#allocation5 + $0xa8] sm:$0xff]
    %v103 = vld [vmem:[#allocation5 + $0xb0] sm:$0xff]
    %v104 = vld [vmem:[#allocation5 + $0xb8] sm:$0xff]
    %v105 = vld [vmem:[#allocation5 + $0xc0] sm:$0xff]
    %v106 = vld [vmem:[#allocation5 + $0xc8] sm:$0xff]
    %v107 = vld [vmem:[#allocation5 + $0xd0] sm:$0xff]
    %v108 = vld [vmem:[#allocation5 + $0xd8] sm:$0xff]
    %v109 = vld [vmem:[#allocation5 + $0xe0] sm:$0xff]
    %v110 = vld [vmem:[#allocation5 + $0xe8] sm:$0xff]
    %v111 = vld [vmem:[#allocation5 + $0xf0] sm:$0xff]
    %v112 = vld [vmem:[#allocation5 + $0xf8] sm:$0xff]
    %v113 = vld [vmem:[#allocation8] sm:$0xf]
    %v114 = vld [vmem:[#allocation8 + $0x4] sm:$0xf]
    %v115 = vld [vmem:[#allocation8 + $0x8] sm:$0xf]
    %v116 = vld [vmem:[#allocation8 + $0xc] sm:$0xf]
    %v117 = vld [vmem:[#allocation8 + $0x10] sm:$0xf]
    %v118 = vld [vmem:[#allocation8 + $0x14] sm:$0xf]
    %v119 = vld [vmem:[#allocation8 + $0x18] sm:$0xf]
    %v120 = vld [vmem:[#allocation8 + $0x1c] sm:$0xf]
    %v121 = vld [vmem:[#allocation8 + $0x20] sm:$0xf]
    %v122 = vld [vmem:[#allocation8 + $0x24] sm:$0xf]
    %v123 = vld [vmem:[#allocation8 + $0x28] sm:$0xf]
    %v124 = vld [vmem:[#allocation8 + $0x2c] sm:$0xf]
    %v125 = vld [vmem:[#allocation8 + $0x30] sm:$0xf]
    %v126 = vld [vmem:[#allocation8 + $0x34] sm:$0xf]
    %v127 = vld [vmem:[#allocation8 + $0x38] sm:$0xf]
    %v128 = vld [vmem:[#allocation8 + $0x3c] sm:$0xf]
    %v129 = vld [vmem:[#allocation8 + $0x40] sm:$0xf]
    %v130 = vld [vmem:[#allocation8 + $0x44] sm:$0xf]
    %v131 = vld [vmem:[#allocation8 + $0x48] sm:$0xf]
    %v132 = vld [vmem:[#allocation8 + $0x4c] sm:$0xf]
    %v133 = vld [vmem:[#allocation8 + $0x50] sm:$0xf]
    %v134 = vld [vmem:[#allocation8 + $0x54] sm:$0xf]
    %v135 = vld [vmem:[#allocation8 + $0x58] sm:$0xf]
    %v136 = vld [vmem:[#allocation8 + $0x5c] sm:$0xf]
    %v137 = vld [vmem:[#allocation8 + $0x60] sm:$0xf]
    %v138 = vld [vmem:[#allocation8 + $0x64] sm:$0xf]
    %v139 = vld [vmem:[#allocation8 + $0x68] sm:$0xf]
    %v140 = vld [vmem:[#allocation8 + $0x6c] sm:$0xf]
    %v141 = vld [vmem:[#allocation8 + $0x70] sm:$0xf]
    %v142 = vld [vmem:[#allocation8 + $0x74] sm:$0xf]
    %v143 = vld [vmem:[#allocation8 + $0x78] sm:$0xf]
    %v144 = vld [vmem:[#allocation8 + $0x7c] sm:$0xf]
    %v145 = vld [vmem:[#allocation8 + $0x80] sm:$0xf]
    %v146 = vld [vmem:[#allocation8 + $0x84] sm:$0xf]
    %v147 = vld [vmem:[#allocation8 + $0x88] sm:$0xf]
    %v148 = vld [vmem:[#allocation8 + $0x8c] sm:$0xf]
    %v149 = vld [vmem:[#allocation8 + $0x90] sm:$0xf]
    %v150 = vld [vmem:[#allocation8 + $0x94] sm:$0xf]
    %v151 = vld [vmem:[#allocation8 + $0x98] sm:$0xf]
    %v152 = vld [vmem:[#allocation8 + $0x9c] sm:$0xf]
    %v153 = vld [vmem:[#allocation8 + $0xa0] sm:$0xf]
    %v154 = vld [vmem:[#allocation8 + $0xa4] sm:$0xf]
    %v155 = vld [vmem:[#allocation8 + $0xa8] sm:$0xf]
    %v156 = vld [vmem:[#allocation8 + $0xac] sm:$0xf]
    %v157 = vld [vmem:[#allocation8 + $0xb0] sm:$0xf]
    %v158 = vld [vmem:[#allocation8 + $0xb4] sm:$0xf]
    %v159 = vld [vmem:[#allocation8 + $0xb8] sm:$0xf]
    %v160 = vld [vmem:[#allocation8 + $0xbc] sm:$0xf]
    %v161 = vld [vmem:[#allocation8 + $0xc0] sm:$0xf]
    %v162 = vld [vmem:[#allocation8 + $0xc4] sm:$0xf]
    %v163 = vld [vmem:[#allocation8 + $0xc8] sm:$0xf]
    %v164 = vld [vmem:[#allocation8 + $0xcc] sm:$0xf]
    %v165 = vld [vmem:[#allocation8 + $0xd0] sm:$0xf]
    %v166 = vld [vmem:[#allocation8 + $0xd4] sm:$0xf]
    %v167 = vld [vmem:[#allocation8 + $0xd8] sm:$0xf]
    %v168 = vld [vmem:[#allocation8 + $0xdc] sm:$0xf]
    %v169 = vld [vmem:[#allocation8 + $0xe0] sm:$0xf]
    %v170 = vld [vmem:[#allocation8 + $0xe4] sm:$0xf]
    %v171 = vld [vmem:[#allocation8 + $0xe8] sm:$0xf]
    %v172 = vld [vmem:[#allocation8 + $0xec] sm:$0xf]
    %v173 = vld [vmem:[#allocation8 + $0xf0] sm:$0xf]
    %v174 = vld [vmem:[#allocation8 + $0xf4] sm:$0xf]
    %v175 = vld [vmem:[#allocation8 + $0xf8] sm:$0xf]
    %v176 = vld [vmem:[#allocation8 + $0xfc] sm:$0xf]
    %v177 = vld [vmem:[%s4] sm:$0x1]
    %v178 = vld [vmem:[#allocation7] sm:$0xf]
    %v179 = vpack.c.bf16 %v80, %v80
    %v212 = vunpack.c.l.b16 %v81
    %v213 = vunpack.c.h.b16 %v81
    %v214 = vunpack.c.l.b16 %v82
    %v215 = vunpack.c.h.b16 %v82
    %v216 = vunpack.c.l.b16 %v83
    %v217 = vunpack.c.h.b16 %v83
    %v218 = vunpack.c.l.b16 %v84
    %v219 = vunpack.c.h.b16 %v84
    %v220 = vunpack.c.l.b16 %v85
    %v221 = vunpack.c.h.b16 %v85
    %v222 = vunpack.c.l.b16 %v86
    %v223 = vunpack.c.h.b16 %v86
    %v224 = vunpack.c.l.b16 %v87
    %v225 = vunpack.c.h.b16 %v87
    %v226 = vunpack.c.l.b16 %v88
    %v227 = vunpack.c.h.b16 %v88
    %v228 = vunpack.c.l.b16 %v89
    %v229 = vunpack.c.h.b16 %v89
    %v230 = vunpack.c.l.b16 %v90
    %v231 = vunpack.c.h.b16 %v90
    %v232 = vunpack.c.l.b16 %v91
    %v233 = vunpack.c.h.b16 %v91
    %v234 = vunpack.c.l.b16 %v92
    %v235 = vunpack.c.h.b16 %v92
    %v236 = vunpack.c.l.b16 %v93
    %v237 = vunpack.c.h.b16 %v93
    %v238 = vunpack.c.l.b16 %v94
    %v239 = vunpack.c.h.b16 %v94
    %v240 = vunpack.c.l.b16 %v95
    %v241 = vunpack.c.h.b16 %v95
    %v242 = vunpack.c.l.b16 %v96
    %v243 = vunpack.c.h.b16 %v96
    %v244 = vunpack.c.l.b16 %v97
    %v245 = vunpack.c.h.b16 %v97
    %v246 = vunpack.c.l.b16 %v98
    %v247 = vunpack.c.h.b16 %v98
    %v248 = vunpack.c.l.b16 %v99
    %v249 = vunpack.c.h.b16 %v99
    %v250 = vunpack.c.l.b16 %v100
    %v251 = vunpack.c.h.b16 %v100
    %v252 = vunpack.c.l.b16 %v101
    %v253 = vunpack.c.h.b16 %v101
    %v254 = vunpack.c.l.b16 %v102
    %v255 = vunpack.c.h.b16 %v102
    %v256 = vunpack.c.l.b16 %v103
    %v257 = vunpack.c.h.b16 %v103
    %v258 = vunpack.c.l.b16 %v104
    %v259 = vunpack.c.h.b16 %v104
    %v260 = vunpack.c.l.b16 %v105
    %v261 = vunpack.c.h.b16 %v105
    %v262 = vunpack.c.l.b16 %v106
    %v263 = vunpack.c.h.b16 %v106
    %v264 = vunpack.c.l.b16 %v107
    %v265 = vunpack.c.h.b16 %v107
    %v266 = vunpack.c.l.b16 %v108
    %v267 = vunpack.c.h.b16 %v108
    %v268 = vunpack.c.l.b16 %v109
    %v269 = vunpack.c.h.b16 %v109
    %v270 = vunpack.c.l.b16 %v110
    %v271 = vunpack.c.h.b16 %v110
    %v272 = vunpack.c.l.b16 %v111
    %v273 = vunpack.c.h.b16 %v111
    %v274 = vunpack.c.l.b16 %v112
    %v275 = vunpack.c.h.b16 %v112
    %v276 = vpack.c.b16 %v216, %v212
    %v277 = vpack.c.b16 %v217, %v213
    %v278 = vpack.c.b16 %v218, %v214
    %v279 = vpack.c.b16 %v219, %v215
    %v280 = vpack.c.b16 %v224, %v220
    %v281 = vpack.c.b16 %v225, %v221
    %v282 = vpack.c.b16 %v226, %v222
    %v283 = vpack.c.b16 %v227, %v223
    %v284 = vpack.c.b16 %v232, %v228
    %v285 = vpack.c.b16 %v233, %v229
    %v286 = vpack.c.b16 %v234, %v230
    %v287 = vpack.c.b16 %v235, %v231
    %v288 = vpack.c.b16 %v240, %v236
    %v289 = vpack.c.b16 %v241, %v237
    %v290 = vpack.c.b16 %v242, %v238
    %v291 = vpack.c.b16 %v243, %v239
    %v292 = vpack.c.b16 %v248, %v244
    %v293 = vpack.c.b16 %v249, %v245
    %v294 = vpack.c.b16 %v250, %v246
    %v295 = vpack.c.b16 %v251, %v247
    %v296 = vpack.c.b16 %v256, %v252
    %v297 = vpack.c.b16 %v257, %v253
    %v298 = vpack.c.b16 %v258, %v254
    %v299 = vpack.c.b16 %v259, %v255
    %v300 = vpack.c.b16 %v264, %v260
    %v301 = vpack.c.b16 %v265, %v261
    %v302 = vpack.c.b16 %v266, %v262
    %v303 = vpack.c.b16 %v267, %v263
    %v304 = vpack.c.b16 %v272, %v268
    %v305 = vpack.c.b16 %v273, %v269
    %v306 = vpack.c.b16 %v274, %v270
    %v307 = vpack.c.b16 %v275, %v271
    %340 = vmatpush.bf16.msra.mxu0 %v304
    %341 = vmatpush.bf16.msra.mxu0 %v300
    %342 = vmatpush.bf16.msra.mxu0 %v296
    %343 = vmatpush.bf16.msra.mxu0 %v292
    %344 = vmatpush.bf16.msra.mxu0 %v288
    %345 = vmatpush.bf16.msra.mxu0 %v284
    %346 = vmatpush.bf16.msra.mxu0 %v280
    %347 = vmatpush.bf16.msra.mxu0 %v276
    %348 = vmatmul.bf16.gmra.mxu0 %v179
    %v349 = vpop.f32.mrf.mxu0
    %v350 = vadd.f32 0.0, %v349
    %v351 = vpop.f32.mrf.mxu0
    %352 = vdwg.mxu0
    %353 = vmatpush.bf16.msra.mxu0 %v305
    %354 = vmatpush.bf16.msra.mxu0 %v301
    %355 = vmatpush.bf16.msra.mxu0 %v297
    %356 = vmatpush.bf16.msra.mxu0 %v293
    %357 = vmatpush.bf16.msra.mxu0 %v289
    %358 = vmatpush.bf16.msra.mxu0 %v285
    %359 = vmatpush.bf16.msra.mxu0 %v281
    %360 = vmatpush.bf16.msra.mxu0 %v277
    %361 = vmatmul.bf16.gmra.mxu0 %v179
    %v362 = vpop.f32.mrf.mxu0
    %v363 = vadd.f32 0.0, %v362
    %v364 = vpop.f32.mrf.mxu0
    %365 = vdwg.mxu0
    %366 = vmatpush.bf16.msra.mxu0 %v306
    %367 = vmatpush.bf16.msra.mxu0 %v302
    %368 = vmatpush.bf16.msra.mxu0 %v298
    %369 = vmatpush.bf16.msra.mxu0 %v294
    %370 = vmatpush.bf16.msra.mxu0 %v290
    %371 = vmatpush.bf16.msra.mxu0 %v286
    %372 = vmatpush.bf16.msra.mxu0 %v282
    %373 = vmatpush.bf16.msra.mxu0 %v278
    %374 = vmatmul.bf16.gmra.mxu0 %v179
    %v375 = vpop.f32.mrf.mxu0
    %v376 = vadd.f32 0.0, %v375
    %v377 = vpop.f32.mrf.mxu0
    %378 = vdwg.mxu0
    %379 = vmatpush.bf16.msra.mxu0 %v307
    %380 = vmatpush.bf16.msra.mxu0 %v303
    %381 = vmatpush.bf16.msra.mxu0 %v299
    %382 = vmatpush.bf16.msra.mxu0 %v295
    %383 = vmatpush.bf16.msra.mxu0 %v291
    %384 = vmatpush.bf16.msra.mxu0 %v287
    %385 = vmatpush.bf16.msra.mxu0 %v283
    %386 = vmatpush.bf16.msra.mxu0 %v279
    %387 = vmatmul.bf16.gmra.mxu0 %v179
    %v388 = vpop.f32.mrf.mxu0
    %v389 = vadd.f32 0.0, %v388
    %v390 = vpop.f32.mrf.mxu0
    %391 = vdwg.mxu0
    %v392 = vpack.c.bf16 %v363, %v350
    %v393 = vpack.c.bf16 %v389, %v376
    %395 = vst [vmem:[#allocation1] ss:$9 sm:$0xff] %v178
    %v396 = vld [vmem:[#allocation1] sm:$0xff]
    %v397 = vld [vmem:[#allocation1 + $0x9] sm:$0xff]
    %v398 = vld [vmem:[#allocation1 + $0x12] sm:$0xff]
    %v399 = vld [vmem:[#allocation1 + $0x1b] sm:$0xff]
    %v400 = vpack.i.b16 %v396, %v396
    %v402 = vperm.slane %v400, 0
    %v403 = vpack.i.b16 %v397, %v397
    %v405 = vperm.slane %v403, 0
    %v406 = vpack.i.b16 %v398, %v398
    %v408 = vperm.slane %v406, 0
    %v409 = vpack.i.b16 %v399, %v399
    %v411 = vperm.slane %v409, 0
    %v412 = vunpack.c.l.bf16 %v392
    %v413 = vunpack.c.h.bf16 %v392
    %v414 = vunpack.c.l.bf16 %v393
    %v415 = vunpack.c.h.bf16 %v393
    %v416 = vunpack.c.l.bf16 %v402
    %v417 = vunpack.c.l.bf16 %v405
    %v418 = vunpack.c.l.bf16 %v408
    %v419 = vunpack.c.l.bf16 %v411
    %v420 = vadd.f32 %v412, %v416
    %v421 = vadd.f32 %v413, %v417
    %v422 = vadd.f32 %v414, %v418
    %v423 = vadd.f32 %v415, %v419
    %v424 = vpack.c.bf16 %v421, %v420
    %v425 = vpack.c.bf16 %v423, %v422
    %v426 = vunpack.c.l.bf16 %v424
    %v427 = vunpack.c.h.bf16 %v424
    %v428 = vunpack.c.l.bf16 %v425
    %v429 = vunpack.c.h.bf16 %v425
    %v430 = vmax.f32 %v426, 0.0
    %v431 = vmax.f32 %v427, 0.0
    %v432 = vmax.f32 %v428, 0.0
    %v433 = vmax.f32 %v429, 0.0
    %v434 = vpack.c.bf16 %v430, %v430
    %v435 = vpack.c.bf16 %v431, %v431
    %v436 = vpack.c.bf16 %v432, %v432
    %v437 = vpack.c.bf16 %v433, %v433
    %v439 = vperm.slane %v177, 0
    %v505 = vunpack.c.l.b16 %v113
    %v506 = vunpack.c.l.b16 %v114
    %v507 = vunpack.c.l.b16 %v115
    %v508 = vunpack.c.l.b16 %v116
    %v509 = vunpack.c.l.b16 %v117
    %v510 = vunpack.c.l.b16 %v118
    %v511 = vunpack.c.l.b16 %v119
    %v512 = vunpack.c.l.b16 %v120
    %v513 = vunpack.c.l.b16 %v121
    %v514 = vunpack.c.l.b16 %v122
    %v515 = vunpack.c.l.b16 %v123
    %v516 = vunpack.c.l.b16 %v124
    %v517 = vunpack.c.l.b16 %v125
    %v518 = vunpack.c.l.b16 %v126
    %v519 = vunpack.c.l.b16 %v127
    %v520 = vunpack.c.l.b16 %v128
    %v521 = vunpack.c.l.b16 %v129
    %v522 = vunpack.c.l.b16 %v130
    %v523 = vunpack.c.l.b16 %v131
    %v524 = vunpack.c.l.b16 %v132
    %v525 = vunpack.c.l.b16 %v133
    %v526 = vunpack.c.l.b16 %v134
    %v527 = vunpack.c.l.b16 %v135
    %v528 = vunpack.c.l.b16 %v136
    %v529 = vunpack.c.l.b16 %v137
    %v530 = vunpack.c.l.b16 %v138
    %v531 = vunpack.c.l.b16 %v139
    %v532 = vunpack.c.l.b16 %v140
    %v533 = vunpack.c.l.b16 %v141
    %v534 = vunpack.c.l.b16 %v142
    %v535 = vunpack.c.l.b16 %v143
    %v536 = vunpack.c.l.b16 %v144
    %v537 = vunpack.c.l.b16 %v145
    %v538 = vunpack.c.l.b16 %v146
    %v539 = vunpack.c.l.b16 %v147
    %v540 = vunpack.c.l.b16 %v148
    %v541 = vunpack.c.l.b16 %v149
    %v542 = vunpack.c.l.b16 %v150
    %v543 = vunpack.c.l.b16 %v151
    %v544 = vunpack.c.l.b16 %v152
    %v545 = vunpack.c.l.b16 %v153
    %v546 = vunpack.c.l.b16 %v154
    %v547 = vunpack.c.l.b16 %v155
    %v548 = vunpack.c.l.b16 %v156
    %v549 = vunpack.c.l.b16 %v157
    %v550 = vunpack.c.l.b16 %v158
    %v551 = vunpack.c.l.b16 %v159
    %v552 = vunpack.c.l.b16 %v160
    %v553 = vunpack.c.l.b16 %v161
    %v554 = vunpack.c.l.b16 %v162
    %v555 = vunpack.c.l.b16 %v163
    %v556 = vunpack.c.l.b16 %v164
    %v557 = vunpack.c.l.b16 %v165
    %v558 = vunpack.c.l.b16 %v166
    %v559 = vunpack.c.l.b16 %v167
    %v560 = vunpack.c.l.b16 %v168
    %v561 = vunpack.c.l.b16 %v169
    %v562 = vunpack.c.l.b16 %v170
    %v563 = vunpack.c.l.b16 %v171
    %v564 = vunpack.c.l.b16 %v172
    %v565 = vunpack.c.l.b16 %v173
    %v566 = vunpack.c.l.b16 %v174
    %v567 = vunpack.c.l.b16 %v175
    %v568 = vunpack.c.l.b16 %v176
    %v569 = vpack.c.b16 %v506, %v505
    %v570 = vpack.c.b16 %v508, %v507
    %v571 = vpack.c.b16 %v510, %v509
    %v572 = vpack.c.b16 %v512, %v511
    %v573 = vpack.c.b16 %v514, %v513
    %v574 = vpack.c.b16 %v516, %v515
    %v575 = vpack.c.b16 %v518, %v517
    %v576 = vpack.c.b16 %v520, %v519
    %v577 = vpack.c.b16 %v522, %v521
    %v578 = vpack.c.b16 %v524, %v523
    %v579 = vpack.c.b16 %v526, %v525
    %v580 = vpack.c.b16 %v528, %v527
    %v581 = vpack.c.b16 %v530, %v529
    %v582 = vpack.c.b16 %v532, %v531
    %v583 = vpack.c.b16 %v534, %v533
    %v584 = vpack.c.b16 %v536, %v535
    %v585 = vpack.c.b16 %v538, %v537
    %v586 = vpack.c.b16 %v540, %v539
    %v587 = vpack.c.b16 %v542, %v541
    %v588 = vpack.c.b16 %v544, %v543
    %v589 = vpack.c.b16 %v546, %v545
    %v590 = vpack.c.b16 %v548, %v547
    %v591 = vpack.c.b16 %v550, %v549
    %v592 = vpack.c.b16 %v552, %v551
    %v593 = vpack.c.b16 %v554, %v553
    %v594 = vpack.c.b16 %v556, %v555
    %v595 = vpack.c.b16 %v558, %v557
    %v596 = vpack.c.b16 %v560, %v559
    %v597 = vpack.c.b16 %v562, %v561
    %v598 = vpack.c.b16 %v564, %v563
    %v599 = vpack.c.b16 %v566, %v565
    %v600 = vpack.c.b16 %v568, %v567
    %633 = vmatpush.bf16.msra.mxu0 %v576
    %634 = vmatpush.bf16.msra.mxu0 %v575
    %635 = vmatpush.bf16.msra.mxu0 %v574
    %636 = vmatpush.bf16.msra.mxu0 %v573
    %637 = vmatpush.bf16.msra.mxu0 %v572
    %638 = vmatpush.bf16.msra.mxu0 %v571
    %639 = vmatpush.bf16.msra.mxu0 %v570
    %640 = vmatpush.bf16.msra.mxu0 %v569
    %641 = vmatmul.bf16.gmra.mxu0 %v434
    %v642 = vpop.f32.mrf.mxu0
    %v643 = vadd.f32 %v439, %v642
    %v644 = vpop.f32.mrf.mxu0
    %645 = vdwg.mxu0
    %646 = vmatpush.bf16.msra.mxu0 %v584
    %647 = vmatpush.bf16.msra.mxu0 %v583
    %648 = vmatpush.bf16.msra.mxu0 %v582
    %649 = vmatpush.bf16.msra.mxu0 %v581
    %650 = vmatpush.bf16.msra.mxu0 %v580
    %651 = vmatpush.bf16.msra.mxu0 %v579
    %652 = vmatpush.bf16.msra.mxu0 %v578
    %653 = vmatpush.bf16.msra.mxu0 %v577
    %654 = vmatmul.bf16.gmra.mxu0 %v435
    %v655 = vpop.f32.mrf.mxu0
    %v656 = vadd.f32 %v643, %v655
    %v657 = vpop.f32.mrf.mxu0
    %658 = vdwg.mxu0
    %659 = vmatpush.bf16.msra.mxu0 %v592
    %660 = vmatpush.bf16.msra.mxu0 %v591
    %661 = vmatpush.bf16.msra.mxu0 %v590
    %662 = vmatpush.bf16.msra.mxu0 %v589
    %663 = vmatpush.bf16.msra.mxu0 %v588
    %664 = vmatpush.bf16.msra.mxu0 %v587
    %665 = vmatpush.bf16.msra.mxu0 %v586
    %666 = vmatpush.bf16.msra.mxu0 %v585
    %667 = vmatmul.bf16.gmra.mxu0 %v436
    %v668 = vpop.f32.mrf.mxu0
    %v669 = vadd.f32 %v656, %v668
    %v670 = vpop.f32.mrf.mxu0
    %671 = vdwg.mxu0
    %672 = vmatpush.bf16.msra.mxu0 %v600
    %673 = vmatpush.bf16.msra.mxu0 %v599
    %674 = vmatpush.bf16.msra.mxu0 %v598
    %675 = vmatpush.bf16.msra.mxu0 %v597
    %676 = vmatpush.bf16.msra.mxu0 %v596
    %677 = vmatpush.bf16.msra.mxu0 %v595
    %678 = vmatpush.bf16.msra.mxu0 %v594
    %679 = vmatpush.bf16.msra.mxu0 %v593
    %680 = vmatmul.bf16.gmra.mxu0 %v437
    %v681 = vpop.f32.mrf.mxu0
    %v682 = vadd.f32 %v669, %v681
    %v683 = vpop.f32.mrf.mxu0
    %684 = vdwg.mxu0
    %v685 = vpack.c.bf16 %v682, %v682
    %686 = vst [vmem:[#allocation10] sm:$0xf] %v685
    // Predicated region
    $region38: #{tpu_custom_call.1} parent=1 // pred_check
      _
    $region39: #{tpu_custom_call.1} parent=1 // pred_check_branch
      %688 = sbr.rel (0) target = $region41
    $region40: #{tpu_custom_call.1} parent=1 // pred_region
      %690 = vsyncadd [#allocation4], 0
      %s692 = sshll.u32 [#allocation10], 4
      %s693 = int_to_ptr.vmem [resolvable:$true] %s692
      %s694 = sshll.u32 %s5, 4
      %s695 = int_to_ptr.hbm [resolvable:$true] %s694
      %697 = dma.vmem_to_hbm [thread:$0]  %s693, 64, %s695, [#allocation4]
    $region41: #{tpu_custom_call.1} parent=1 // pred_fallthru
      _
    // Predicated region
    $region42: #{tpu_custom_call.1} parent=1 // pred_check
      _
    $region43: #{tpu_custom_call.1} parent=1 // pred_check_branch
      %699 = sbr.rel (0) target = $region45
    $region44: #{tpu_custom_call.1} parent=1 // pred_region
      %701 = dma.done [#allocation4], 64
    $region45: #{tpu_custom_call.1} parent=1 // pred_fallthru
      _
    %702 = vsyncpa [#allocation3], 1
    %703 = vsyncpa [#allocation6], 1
    %704 = vsyncpa [#allocation9], 1
    %705 = vsyncpa [#allocation4], 1

</llo_original>
